<compile_context>
chip_gen: v5e
topology: v5e:2x2
jax: 0.10.0
libtpu: 0.0.40
codegen_flags: <defaults>
</compile_context>

<pallas_src>
import functools

import jax
import jax.numpy as jnp
import numpy as np
from jax.experimental import pallas as pl
from jax.experimental.pallas import tpu as pltpu


def _round_up(x, m):
    return (x + m - 1) // m * m


# ----------------------------------------------------------------------------- kernel ----
def _sds_kernel(guidance_scale,
                coef_ref, lat_ref, eps_ref, eps_u_ref, eps_t_ref,
                part_ref, zt_ref):
    """SDS elementwise math + per-tile partial reduction over one (TILE_R, LANE_W) tile.

    coef_ref  : (TILE_R, 3) f32  columns: [0.18215*sqrt(a), sqrt(1-a), sqrt(a)*(1-a)]
    lat_ref   : (TILE_R, W)      unscaled VAE latent
    eps_ref   : (TILE_R, W)      injected gaussian noise
    eps_u_ref : (TILE_R, W)      UNet unconditional eps prediction
    eps_t_ref : (TILE_R, W)      UNet text-conditional eps prediction
    part_ref  : (8, W)      f32  per-tile partial sums (summed in the wrapper)
    zt_ref    : (TILE_R, W)      noised latent z_t
    """
    coef = coef_ref[...]                       # (TILE_R, 3) f32
    c_lat = coef[:, 0:1]                       # 0.18215 * sqrt(alphas_cumprod[t])
    c_eps = coef[:, 1:2]                       # sqrt(1 - alphas_cumprod[t])
    c_grad = coef[:, 2:3]                      # sqrt(alphas_cumprod[t]) * (1 - alphas_cumprod[t])

    lat = lat_ref[...].astype(jnp.float32)
    eps = eps_ref[...].astype(jnp.float32)

    # scheduler.add_noise: z_t = sqrt(a)*(0.18215*x0) + sqrt(1-a)*eps
    # (0.18215 folded into c_lat so the scaled latent is never materialized).
    zt_ref[...] = (c_lat * lat + c_eps * eps).astype(zt_ref.dtype)

    # classifier-free guidance + SDS gradient:
    #   grad = sqrt(a)*sigma * (eps_u + g*(eps_t - eps_u) - eps)
    e_u = eps_u_ref[...].astype(jnp.float32)
    e_t = eps_t_ref[...].astype(jnp.float32)
    grad = c_grad * (e_u + jnp.float32(guidance_scale) * (e_t - e_u) - eps)

    # torch.nan_to_num(grad, 0.0, 0.0, 0.0) == (isfinite ? grad : 0): 1 cmp + 1 select.
    grad = jnp.where(jnp.isfinite(grad), grad, jnp.float32(0.0))

    # Per-tile partial of sum(grad * x0): fold sublane groups only (pure VPU adds,
    # no cross-lane reduce, lane-dense unmasked store).  Final sum + scale in wrapper.
    prod = grad * lat                          # (TILE_R, W) f32
    tile_r, lane_w = prod.shape
    part_ref[...] = jnp.sum(prod.reshape(tile_r // 8, 8, lane_w), axis=0)


# ---------------------------------------------------------------------- layout helpers ----
def _pick_lane_width(total_elems, feat_dim):
    """Widest multiple-of-128 lane width dividing the (128-padded) per-sample feature dim
    that still leaves >= 8 rows; tiny slabs fall back to 128 (fewest, fullest vregs)."""
    candidates = [w for w in (2048, 1024, 512, 256, 128) if feat_dim % w == 0]
    for w in candidates:
        if total_elems // w >= 8:
            return w
    return candidates[-1]


def _pick_row_tile(num_rows, lane_w, target_tile_bytes):
    """Row tile (multiple of 8) whose f32 tile stays within target_tile_bytes, plus the
    (possibly padded) row count it must evenly divide."""
    max_rows = max(8, (target_tile_bytes // (lane_w * 4)) // 8 * 8)
    if num_rows <= max_rows:
        tile = _round_up(num_rows, 8)
        return tile, tile
    t = max_rows
    while t >= 8:                  # prefer an exact multiple-of-8 divisor (no row padding)
        if num_rows % t == 0:
            return t, num_rows
        t -= 8
    return max_rows, _round_up(num_rows, max_rows)


# ---------------------------------------------------------------------------- wrapper ----
def sds_loss_forward(unscaled_latent, eps, eps_uncond, eps_text,
                     alpha_t, sigma_t, guidance_scale, *, zt_dtype=None,
                     target_tile_bytes=4 << 20, vmem_limit_bytes=56 << 20):
    """Mirrors SDSLoss.forward downstream of the pretrained networks.

    TODO(synk): x = x_aug*2-1 -> pipe.vae.encode(x).latent_dist.sample() (pretrained VAE),
    pipe.unet(z_in, t, text_embeddings) (pretrained UNet) and the CLIP text encoder have no
    Pallas equivalent; their outputs enter here as `unscaled_latent` / `eps_uncond` /
    `eps_text` (any float dtype; bf16 recommended for the UNet tensors).

    Returns (scalar sds_loss, noised latent z_t in NCHW layout).
    """
    B, C, H, W = unscaled_latent.shape
    D = C * H * W
    if zt_dtype is None:
        zt_dtype = unscaled_latent.dtype   # pass jnp.bfloat16 if the downstream UNet is bf16

    # Lane-dense 2D slab layout: each sample's D_pad elements occupy `rows_per_sample`
    # consecutive rows of width lane_w (multiple of 128); rows padded to a tile multiple.
    D_pad = _round_up(D, 128)
    lane_w = _pick_lane_width(B * D_pad, D_pad)
    rows_per_sample = D_pad // lane_w
    R = B * rows_per_sample
    tile_r, R_pad = _pick_row_tile(R, lane_w, target_tile_bytes)
    num_tiles = R_pad // tile_r

    def slab(a):
        a2 = a.reshape(B, D)
        if D_pad != D:
            a2 = jnp.pad(a2, ((0, 0), (0, D_pad - D)))
        s = a2.reshape(R, lane_w)
        if R_pad != R:
            s = jnp.pad(s, ((0, R_pad - R), (0, 0)))
        return s

    # Per-sample scheduler coefficients, hoisted out of the kernel and packed into one
    # (R_pad, 3) stream (1 coefficient DMA per grid step instead of 3).
    alpha_t = alpha_t.reshape(B).astype(jnp.float32)
    sigma_t = sigma_t.reshape(B).astype(jnp.float32)
    sqrt_a = jnp.sqrt(alpha_t)
    coef = jnp.stack([jnp.float32(0.18215) * sqrt_a,    # folds VAE latent scale into z_t
                      jnp.sqrt(sigma_t),                 # sigma == 1 - alphas_cumprod
                      sqrt_a * sigma_t], axis=1)         # (B, 3)
    coef = jnp.repeat(coef, rows_per_sample, axis=0)     # (R, 3)
    if R_pad != R:
        coef = jnp.pad(coef, ((0, R_pad - R), (0, 0)))   # zero coeffs -> pad rows add 0

    loss_scale = 0.18215 / float(B * H * W)              # folds 0.18215*x0 and .sum(1).mean()

    wide_spec = pl.BlockSpec((tile_r, lane_w), lambda i: (i, 0))
    kernel = functools.partial(_sds_kernel, float(guidance_scale))

    partials, zt = pl.pallas_call(
        kernel,
        grid=(num_tiles,),
        in_specs=[pl.BlockSpec((tile_r, 3), lambda i: (i, 0)),
                  wide_spec, wide_spec, wide_spec, wide_spec],
        out_specs=(
            pl.BlockSpec((8, lane_w), lambda i: (i, 0)),   # per-tile partial sums
            wide_spec,                                     # z_t tile
        ),
        out_shape=(
            jax.ShapeDtypeStruct((num_tiles * 8, lane_w), jnp.float32),
            jax.ShapeDtypeStruct((R_pad, lane_w), zt_dtype),
        ),
        compiler_params=pltpu.CompilerParams(
            # No revisited output blocks -> row-tile axis is parallel (v7x megacore).
            dimension_semantics=("parallel",),
            vmem_limit_bytes=int(vmem_limit_bytes),
        ),
    )(coef, slab(unscaled_latent), slab(eps), slab(eps_uncond), slab(eps_text))

    sds_loss = jnp.sum(partials) * jnp.float32(loss_scale)
    zt = zt[:R].reshape(B, D_pad)[:, :D].reshape(B, C, H, W)
    return sds_loss, zt


# ------------------------------------------------------------------------------- main ----
if __name__ == "__main__":
    key = jax.random.PRNGKey(0)
    k_lat, k_eps, k_eu, k_et, k_t = jax.random.split(key, 5)

    # Small shapes: image (B,3,64,64) -> latent (B,4,8,8).
    B, C, H, W = 2, 4, 8, 8
    NUM_TIMESTEPS = 1000
    GUIDANCE_SCALE = 100.0

    # Deterministic DDPM "scaled_linear" schedule (stand-in for pipe.scheduler.alphas_cumprod).
    betas = np.linspace(0.00085 ** 0.5, 0.012 ** 0.5, NUM_TIMESTEPS, dtype=np.float64) ** 2
    alphas_cumprod = jnp.asarray(np.cumprod(1.0 - betas), dtype=jnp.float32)
    sigmas = 1.0 - alphas_cumprod

    # Stand-ins for the outputs of the pretrained VAE / UNet (see TODO(synk) above).
    unscaled_latent = jax.random.normal(k_lat, (B, C, H, W), dtype=jnp.float32)
    eps = jax.random.normal(k_eps, (B, C, H, W), dtype=jnp.float32)          # torch.randn_like
    eps_uncond = jax.random.normal(k_eu, (B, C, H, W), dtype=jnp.float32)
    eps_text = jax.random.normal(k_et, (B, C, H, W), dtype=jnp.float32)

    # timestep = randint(low=50, high=min(950, T) - 1)
    timestep = jax.random.randint(k_t, (B,), 50, min(950, NUM_TIMESTEPS) - 1)
    alpha_t = alphas_cumprod[timestep]   # (B,)
    sigma_t = sigmas[timestep]           # (B,)

    loss, zt = sds_loss_forward(unscaled_latent, eps, eps_uncond, eps_text,
                                alpha_t, sigma_t, GUIDANCE_SCALE)
    loss = jax.block_until_ready(loss)
    zt = jax.block_until_ready(zt)

    # Pure-JAX reference of the same math (per-sample broadcast of the (B,) coefficients).
    cur_lat = 0.18215 * unscaled_latent
    e_cfg = eps_uncond + GUIDANCE_SCALE * (eps_text - eps_uncond)
    grad = (jnp.sqrt(alpha_t) * sigma_t).reshape(B, 1, 1, 1) * (e_cfg - eps)
    grad = jnp.nan_to_num(grad, nan=0.0, posinf=0.0, neginf=0.0)
    ref_loss = (grad * cur_lat).sum(axis=1).mean()
    ref_zt = (jnp.sqrt(alpha_t).reshape(B, 1, 1, 1) * cur_lat
              + jnp.sqrt(1.0 - alpha_t).reshape(B, 1, 1, 1) * eps)

    assert jnp.allclose(loss, ref_loss, rtol=1e-4, atol=1e-4), (loss, ref_loss)
    assert jnp.allclose(zt, ref_zt, rtol=1e-4, atol=1e-4)
    print("KERNEL_OK")
</pallas_src>

<mosaic_0001>
module attributes {stable_mosaic.version = 11 : i64} {
  func.func @_sds_kernel(%arg0: i32, %arg1: memref<8x3xf32, #tpu.memory_space<vmem>>, %arg2: memref<8x128xf32, #tpu.memory_space<vmem>>, %arg3: memref<8x128xf32, #tpu.memory_space<vmem>>, %arg4: memref<8x128xf32, #tpu.memory_space<vmem>>, %arg5: memref<8x128xf32, #tpu.memory_space<vmem>>, %arg6: memref<8x128xf32, #tpu.memory_space<vmem>>, %arg7: memref<8x128xf32, #tpu.memory_space<vmem>>) attributes {dimension_semantics = [#tpu.dimension_semantics<parallel>], iteration_bounds = array<i64: 1>, scalar_prefetch = 0 : i64, scratch_operands = 0 : i64, tpu.core_type = #tpu.core_type<tc>, window_params = [{transform_indices = @transform_0, window_bounds = array<i64: 8, 3>}, {transform_indices = @transform_1, window_bounds = array<i64: 8, 128>}, {transform_indices = @transform_2, window_bounds = array<i64: 8, 128>}, {transform_indices = @transform_3, window_bounds = array<i64: 8, 128>}, {transform_indices = @transform_4, window_bounds = array<i64: 8, 128>}, {transform_indices = @transform_5, window_bounds = array<i64: 8, 128>}, {transform_indices = @transform_6, window_bounds = array<i64: 8, 128>}]} {
    %c0 = arith.constant 0 : index
    %c0_0 = arith.constant 0 : index
    %0 = vector.load %arg1[%c0, %c0_0] : memref<8x3xf32, #tpu.memory_space<vmem>>, vector<8x3xf32>
    %1 = vector.extract_strided_slice %0 {offsets = [0, 0], sizes = [8, 1], strides = [1, 1]} : vector<8x3xf32> to vector<8x1xf32>
    %2 = vector.extract_strided_slice %0 {offsets = [0, 1], sizes = [8, 1], strides = [1, 1]} : vector<8x3xf32> to vector<8x1xf32>
    %3 = vector.extract_strided_slice %0 {offsets = [0, 2], sizes = [8, 1], strides = [1, 1]} : vector<8x3xf32> to vector<8x1xf32>
    %c0_1 = arith.constant 0 : index
    %c0_2 = arith.constant 0 : index
    %4 = vector.load %arg2[%c0_1, %c0_2] : memref<8x128xf32, #tpu.memory_space<vmem>>, vector<8x128xf32>
    %c0_3 = arith.constant 0 : index
    %c0_4 = arith.constant 0 : index
    %5 = vector.load %arg3[%c0_3, %c0_4] : memref<8x128xf32, #tpu.memory_space<vmem>>, vector<8x128xf32>
    %6 = vector.broadcast %1 : vector<8x1xf32> to vector<8x128xf32>
    %7 = arith.mulf %6, %4 : vector<8x128xf32>
    %8 = vector.broadcast %2 : vector<8x1xf32> to vector<8x128xf32>
    %9 = arith.mulf %8, %5 : vector<8x128xf32>
    %10 = arith.addf %7, %9 : vector<8x128xf32>
    %c0_5 = arith.constant 0 : index
    %c0_6 = arith.constant 0 : index
    %11 = vector.load %arg7[%c0_5, %c0_6] : memref<8x128xf32, #tpu.memory_space<vmem>>, vector<8x128xf32>
    tpu.vector_store %arg7[%c0_5, %c0_6], %10 {strides = array<i32>} : memref<8x128xf32, #tpu.memory_space<vmem>>, vector<8x128xf32>,
    %c0_7 = arith.constant 0 : index
    %c0_8 = arith.constant 0 : index
    %12 = vector.load %arg4[%c0_7, %c0_8] : memref<8x128xf32, #tpu.memory_space<vmem>>, vector<8x128xf32>
    %c0_9 = arith.constant 0 : index
    %c0_10 = arith.constant 0 : index
    %13 = vector.load %arg5[%c0_9, %c0_10] : memref<8x128xf32, #tpu.memory_space<vmem>>, vector<8x128xf32>
    %14 = arith.subf %13, %12 : vector<8x128xf32>
    %cst = arith.constant 1.000000e+02 : f32
    %15 = vector.broadcast %cst : f32 to vector<8x128xf32>
    %16 = arith.mulf %15, %14 : vector<8x128xf32>
    %17 = arith.addf %12, %16 : vector<8x128xf32>
    %18 = arith.subf %17, %5 : vector<8x128xf32>
    %19 = vector.broadcast %3 : vector<8x1xf32> to vector<8x128xf32>
    %20 = arith.mulf %19, %18 : vector<8x128xf32>
    %21 = tpu.weird %20 : vector<8x128xf32> -> vector<8x128xi1>
    %cst_11 = arith.constant dense<true> : vector<8x128xi1>
    %22 = arith.xori %21, %cst_11 : vector<8x128xi1>
    %cst_12 = arith.constant 0.000000e+00 : f32
    %23 = vector.broadcast %cst_12 : f32 to vector<8x128xf32>
    %24 = arith.select %22, %20, %23 : vector<8x128xi1>, vector<8x128xf32>
    %25 = arith.mulf %24, %4 : vector<8x128xf32>
    %26 = vector.shape_cast %25 : vector<8x128xf32> to vector<1x8x128xf32>
    %cst_13 = arith.constant dense<0.000000e+00> : vector<8x128xf32>
    %27 = vector.multi_reduction <add>, %26, %cst_13 [0] : vector<1x8x128xf32> to vector<8x128xf32>
    %c0_14 = arith.constant 0 : index
    %c0_15 = arith.constant 0 : index
    %28 = vector.load %arg6[%c0_14, %c0_15] : memref<8x128xf32, #tpu.memory_space<vmem>>, vector<8x128xf32>
    tpu.vector_store %arg6[%c0_14, %c0_15], %27 {strides = array<i32>} : memref<8x128xf32, #tpu.memory_space<vmem>>, vector<8x128xf32>,
    return
  }
  func.func @transform_0(%arg0: i32) -> (i32, i32) {
    %c0_i32 = arith.constant 0 : i32
    %c0_i32_0 = arith.constant 0 : i32
    return %arg0, %c0_i32 : i32, i32
  }
  func.func @transform_1(%arg0: i32) -> (i32, i32) {
    %c0_i32 = arith.constant 0 : i32
    %c0_i32_0 = arith.constant 0 : i32
    return %arg0, %c0_i32 : i32, i32
  }
  func.func @transform_2(%arg0: i32) -> (i32, i32) {
    %c0_i32 = arith.constant 0 : i32
    %c0_i32_0 = arith.constant 0 : i32
    return %arg0, %c0_i32 : i32, i32
  }
  func.func @transform_3(%arg0: i32) -> (i32, i32) {
    %c0_i32 = arith.constant 0 : i32
    %c0_i32_0 = arith.constant 0 : i32
    return %arg0, %c0_i32 : i32, i32
  }
  func.func @transform_4(%arg0: i32) -> (i32, i32) {
    %c0_i32 = arith.constant 0 : i32
    %c0_i32_0 = arith.constant 0 : i32
    return %arg0, %c0_i32 : i32, i32
  }
  func.func @transform_5(%arg0: i32) -> (i32, i32) {
    %c0_i32 = arith.constant 0 : i32
    %c0_i32_0 = arith.constant 0 : i32
    return %arg0, %c0_i32 : i32, i32
  }
  func.func @transform_6(%arg0: i32) -> (i32, i32) {
    %c0_i32 = arith.constant 0 : i32
    %c0_i32_0 = arith.constant 0 : i32
    return %arg0, %c0_i32 : i32, i32
  }
}

</mosaic_0001>

<llo_original>
// kernel: tpu_custom_call.1
$region0: #{tpu_custom_call.1}
  #allocation0 [shape = 'u32[]', space=smem, size = 0x4, offset = 0x4, fixed_abs, tag = 'smem constant byte address 0x4 - core index']
  #allocation1 [shape = 'u32[72,128]{1,0:T(1,128)}', space=vmem, size = 0x9000, scoped, tag = 'internal scratch']
  %s0 = inlined_call_operand.vmem [shape: f32[8,3], index: 0, kind: input, shape index: {}]
  %s1 = inlined_call_operand.vmem [shape: f32[8,128], index: 1, kind: input, shape index: {}]
  %s2 = inlined_call_operand.hbm [shape: f32[8,128], index: 2, kind: input, shape index: {}]
  %s3 = inlined_call_operand.hbm [shape: f32[8,128], index: 3, kind: input, shape index: {}]
  %s4 = inlined_call_operand.hbm [shape: f32[8,128], index: 4, kind: input, shape index: {}]
  %s5 = inlined_call_operand.hbm [shape: f32[8,128], index: 5, kind: output, shape index: {0}]
  %s6 = inlined_call_operand.hbm [shape: f32[8,128], index: 6, kind: output, shape index: {1}]
  %7 = xla_tuple %s5, %s6
  %s8 = sld [smem:[#allocation0]]
  $region50: #{tpu_custom_call.1} parent=0
    _
  %s10 = ssub.s32 1, %s8
  %s11 = scalar_select 0, %s10, %s8
  $region1: #{tpu_custom_call.1} parent=0
    #allocation2 [shape = 'u8[4096]{0}', space=vmem, size = 0x1000, scoped, tag = 'input window, operand 2, single buffered']
    #allocation3 [shape = 's32[1]{0}', space=sflag, size = 0x4, scoped, tag = 'scoped memory for tpu_custom_call.1']
    #allocation4 [shape = 's32[1]{0}', space=sflag, size = 0x4, scoped, tag = 'scoped memory for tpu_custom_call.1']
    #allocation5 [shape = 'u8[4096]{0}', space=vmem, size = 0x1000, scoped, tag = 'input window, operand 3, single buffered']
    #allocation6 [shape = 's32[1]{0}', space=sflag, size = 0x4, scoped, tag = 'scoped memory for tpu_custom_call.1']
    #allocation7 [shape = 'u8[4096]{0}', space=vmem, size = 0x1000, scoped, tag = 'input window, operand 4, single buffered']
    #allocation8 [shape = 'u8[4096]{0}', space=vmem, size = 0x1000, scoped, tag = 'output window, operand 0, single buffered']
    #allocation9 [shape = 'u8[4096]{0}', space=vmem, size = 0x1000, scoped, tag = 'output window, operand 1, single buffered']
    #allocation10 [shape = 's32[1]{0}', space=sflag, size = 0x4, scoped, tag = 'scoped memory for tpu_custom_call.1']
    %12 = vsyncpa [#allocation3], 0
    %13 = vsyncpa [#allocation6], 0
    %14 = vsyncpa [#allocation4], 0
    %15 = vsyncpa [#allocation10], 0
    // Predicated region
    $region2: #{tpu_custom_call.1} parent=1 // pred_check
      _
    $region3: #{tpu_custom_call.1} parent=1 // pred_check_branch
      %17 = sbr.rel (0) target = $region5
    $region4: #{tpu_custom_call.1} parent=1 // pred_region
      _
    $region5: #{tpu_custom_call.1} parent=1 // pred_fallthru
      _
    // Predicated region
    $region6: #{tpu_custom_call.1} parent=1 // pred_check
      _
    $region7: #{tpu_custom_call.1} parent=1 // pred_check_branch
      %19 = sbr.rel (0) target = $region9
    $region8: #{tpu_custom_call.1} parent=1 // pred_region
      _
    $region9: #{tpu_custom_call.1} parent=1 // pred_fallthru
      _
    // Predicated region
    $region10: #{tpu_custom_call.1} parent=1 // pred_check
      _
    $region11: #{tpu_custom_call.1} parent=1 // pred_check_branch
      %21 = sbr.rel (0) target = $region13
    $region12: #{tpu_custom_call.1} parent=1 // pred_region
      %23 = vsyncadd [#allocation3], 0
      %s25 = sshll.u32 %s2, 4
      %s26 = int_to_ptr.hbm [resolvable:$true] %s25
      %s27 = sshll.u32 [#allocation2], 4
      %s28 = int_to_ptr.vmem [resolvable:$true] %s27
      %30 = dma.hbm_to_vmem [thread:$0]  %s26, 128, %s28, [#allocation3]
    $region13: #{tpu_custom_call.1} parent=1 // pred_fallthru
      _
    // Predicated region
    $region14: #{tpu_custom_call.1} parent=1 // pred_check
      _
    $region15: #{tpu_custom_call.1} parent=1 // pred_check_branch
      %32 = sbr.rel (0) target = $region17
    $region16: #{tpu_custom_call.1} parent=1 // pred_region
      %34 = vsyncadd [#allocation6], 0
      %s36 = sshll.u32 %s3, 4
      %s37 = int_to_ptr.hbm [resolvable:$true] %s36
      %s38 = sshll.u32 [#allocation5], 4
      %s39 = int_to_ptr.vmem [resolvable:$true] %s38
      %41 = dma.hbm_to_vmem [thread:$0]  %s37, 128, %s39, [#allocation6]
    $region17: #{tpu_custom_call.1} parent=1 // pred_fallthru
      _
    // Predicated region
    $region18: #{tpu_custom_call.1} parent=1 // pred_check
      _
    $region19: #{tpu_custom_call.1} parent=1 // pred_check_branch
      %43 = sbr.rel (0) target = $region21
    $region20: #{tpu_custom_call.1} parent=1 // pred_region
      %45 = vsyncadd [#allocation6], 0
      %s47 = sshll.u32 %s4, 4
      %s48 = int_to_ptr.hbm [resolvable:$true] %s47
      %s49 = sshll.u32 [#allocation7], 4
      %s50 = int_to_ptr.vmem [resolvable:$true] %s49
      %52 = dma.hbm_to_vmem [thread:$0]  %s48, 128, %s50, [#allocation6]
    $region21: #{tpu_custom_call.1} parent=1 // pred_fallthru
      _
    // Predicated region
    $region22: #{tpu_custom_call.1} parent=1 // pred_check
      _
    $region23: #{tpu_custom_call.1} parent=1 // pred_check_branch
      %54 = sbr.rel (0) target = $region25
    $region24: #{tpu_custom_call.1} parent=1 // pred_region
      %56 = dma.done [#allocation3], 128
    $region25: #{tpu_custom_call.1} parent=1 // pred_fallthru
      _
    // Predicated region
    $region26: #{tpu_custom_call.1} parent=1 // pred_check
      _
    $region27: #{tpu_custom_call.1} parent=1 // pred_check_branch
      %58 = sbr.rel (0) target = $region29
    $region28: #{tpu_custom_call.1} parent=1 // pred_region
      %60 = dma.done [#allocation6], 128
    $region29: #{tpu_custom_call.1} parent=1 // pred_fallthru
      _
    // Predicated region
    $region30: #{tpu_custom_call.1} parent=1 // pred_check
      _
    $region31: #{tpu_custom_call.1} parent=1 // pred_check_branch
      %62 = sbr.rel (0) target = $region33
    $region32: #{tpu_custom_call.1} parent=1 // pred_region
      %64 = dma.done [#allocation6], 128
    $region33: #{tpu_custom_call.1} parent=1 // pred_fallthru
      _
    %v65 = vld [vmem:[%s0] sm:$0xff]
    %v66 = vld [vmem:[%s1] sm:$0xff]
    %v67 = vld [vmem:[#allocation2] sm:$0xff]
    %69 = vset.pattern.permute.xlu0 0
    %70 = vperm.xlu0 %69, %v65
    %v71 = vpop.permute.xlu0 %70
    %v73 = vmul.f32 %v71, %v66
    %74 = vset.pattern.permute.xlu0 1
    %75 = vperm.xlu0 %74, %v65
    %v76 = vpop.permute.xlu0 %75
    %v78 = vmul.f32 %v76, %v67
    %v79 = vadd.f32 %v73, %v78
    %80 = vst [vmem:[#allocation9] sm:$0xff] %v79
    %v81 = vld [vmem:[#allocation5] sm:$0xff]
    %v82 = vld [vmem:[#allocation7] sm:$0xff]
    %v83 = vsub.f32 %v82, %v81
    %v84 = vmul.f32 %v83, 100.0
    %v85 = vadd.f32 %v81, %v84
    %v86 = vsub.f32 %v85, %v67
    %87 = vset.pattern.permute.xlu0 2
    %88 = vperm.xlu0 %87, %v65
    %v89 = vpop.permute.xlu0 %88
    %v91 = vmul.f32 %v89, %v86
    %vm92 = vweird.f32 %v91
    %vm93 = vmxor %vm92, 1
    %v94 = vsel %vm93, %v91, 0.0
    %v95 = vmul.f32 %v94, %v66
    %v96 = vadd.f32 %v95, 0.0
    %97 = vst [vmem:[#allocation8] sm:$0xff] %v96
    // Predicated region
    $region34: #{tpu_custom_call.1} parent=1 // pred_check
      _
    $region35: #{tpu_custom_call.1} parent=1 // pred_check_branch
      %99 = sbr.rel (0) target = $region37
    $region36: #{tpu_custom_call.1} parent=1 // pred_region
      %101 = vsyncadd [#allocation4], 0
      %s103 = sshll.u32 [#allocation8], 4
      %s104 = int_to_ptr.vmem [resolvable:$true] %s103
      %s105 = sshll.u32 %s5, 4
      %s106 = int_to_ptr.hbm [resolvable:$true] %s105
      %108 = dma.vmem_to_hbm [thread:$0]  %s104, 128, %s106, [#allocation4]
    $region37: #{tpu_custom_call.1} parent=1 // pred_fallthru
      _
    // Predicated region
    $region38: #{tpu_custom_call.1} parent=1 // pred_check
      _
    $region39: #{tpu_custom_call.1} parent=1 // pred_check_branch
      %110 = sbr.rel (0) target = $region41
    $region40: #{tpu_custom_call.1} parent=1 // pred_region
      %112 = vsyncadd [#allocation10], 0
      %s114 = sshll.u32 [#allocation9], 4
      %s115 = int_to_ptr.vmem [resolvable:$true] %s114
      %s116 = sshll.u32 %s6, 4
      %s117 = int_to_ptr.hbm [resolvable:$true] %s116
      %119 = dma.vmem_to_hbm [thread:$0]  %s115, 128, %s117, [#allocation10]
    $region41: #{tpu_custom_call.1} parent=1 // pred_fallthru
      _
    // Predicated region
    $region42: #{tpu_custom_call.1} parent=1 // pred_check
      _
    $region43: #{tpu_custom_call.1} parent=1 // pred_check_branch
      %121 = sbr.rel (0) target = $region45
    $region44: #{tpu_custom_call.1} parent=1 // pred_region
      %123 = dma.done [#allocation4], 128
    $region45: #{tpu_custom_call.1} parent=1 // pred_fallthru
      _
    // Predicated region
    $region46: #{tpu_custom_call.1} parent=1 // pred_check
      _
    $region47: #{tpu_custom_call.1} parent=1 // pred_check_branch
      %125 = sbr.rel (0) target = $region49
    $region48: #{tpu_custom_call.1} parent=1 // pred_region
      %127 = dma.done [#allocation10], 128
    $region49: #{tpu_custom_call.1} parent=1 // pred_fallthru
      _
    %128 = vsyncpa [#allocation3], 1
    %129 = vsyncpa [#allocation6], 1
    %130 = vsyncpa [#allocation4], 1
    %131 = vsyncpa [#allocation10], 1

</llo_original>
